<compile_context>
chip_gen: v7x
topology: tpu7x:2x2x1
jax: 0.10.0
libtpu: 0.0.40
codegen_flags: <defaults>
</compile_context>

<pallas_src>
import numpy as np
import jax
import jax.numpy as jnp
from jax.experimental import pallas as pl
from jax.experimental.pallas import tpu as pltpu

_FC1_VPU_MAX_K = 8  # tiny-K threshold: below this fc1 runs as VPU broadcast FMAs


def two_layer_kernel(x_ref, w1t_ref, b1_ref, w2t_ref, b2_ref, o_ref):
    """One batch tile of relu(x @ W1^T + b1) @ W2^T + b2 (weights pre-transposed)."""
    x = x_ref[...]                           # (tb, in_dim)
    in_dim = w1t_ref.shape[0]

    if in_dim <= _FC1_VPU_MAX_K:
        # fc1 on the VPU: a handful of lane-broadcast FMAs over the (tb, hidden)
        # tile.  A (tb, 2) @ (2, H) matmul would waste the MXU and still pay its
        # push/drain latency.
        h = b1_ref[...]                      # (1, hidden), broadcasts over rows
        for k in range(in_dim):              # static Python unroll (in_dim tiny)
            h = h + x[:, k:k + 1] * w1t_ref[k:k + 1, :]
    else:
        # Larger contraction: let the MXU do it in one pass.
        h = jnp.dot(x, w1t_ref[...], preferred_element_type=jnp.float32) + b1_ref[...]

    h = jnp.maximum(h, 0.0)                  # ReLU on the VPU

    # fc2 on the MXU with pre-transposed weights: (tb, H) @ (H, out_dim).
    y = jnp.dot(h, w2t_ref[...], preferred_element_type=jnp.float32) + b2_ref[...]
    o_ref[...] = y.astype(o_ref.dtype)       # full-out_dim tile, no padded lanes


def prepare_params(w1, b1, w2, b2):
    """One-time layout plumbing (do this at parameter-setup time, not per call)."""
    w1t = jnp.asarray(w1).T                       # (in_dim, hidden)
    w2t = jnp.asarray(w2).T                       # (hidden, out_dim)
    b1_2d = jnp.asarray(b1).reshape(1, -1)        # (1, hidden)
    b2_2d = jnp.asarray(b2).reshape(1, -1)        # (1, out_dim)
    return w1t, b1_2d, w2t, b2_2d


def _choose_batch_tile(B, batch_tile):
    """Pick a sublane-aligned batch tile; prefer >= 2 grid steps (v7x 2 TCs)."""
    if B <= 8:
        return B                                  # single tiny step, no padding games
    tb = min(batch_tile, ((B + 7) // 8) * 8)
    if B > tb:
        return tb                                 # already >= 2 steps
    # B fits in one tile: split into ~2 steps so the "parallel" axis can shard
    # across v7x's two TensorCores (harmless on single-TC v5e/v6e).
    half = ((((B + 1) // 2) + 7) // 8) * 8
    return max(8, min(tb, half))


def two_layer_nn(x, w1t, b1_2d, w2t, b2_2d, *, batch_tile=1024):
    """Forward pass. x: (B, in_dim). Params must come from prepare_params()."""
    B, in_dim = x.shape
    hidden = w1t.shape[1]
    out_dim = w2t.shape[1]

    tb = _choose_batch_tile(B, batch_tile)
    n_tiles = pl.cdiv(B, tb)
    Bp = n_tiles * tb
    if Bp != B:
        # Pad batch rows with zeros; padded rows produce garbage that is sliced
        # off below.  Keeps every grid step identical and fully pipelined.
        x = jnp.pad(x, ((0, Bp - B), (0, 0)))

    # TODO(synk): for very large hidden (resident W2^T beyond a few MiB) tile the
    # hidden/contraction axis as an "arbitrary" grid dim with a VMEM accumulator
    # to stay inside v7x's 64 MiB VMEM; unnecessary at these sizes.
    out = pl.pallas_call(
        two_layer_kernel,
        out_shape=jax.ShapeDtypeStruct((Bp, out_dim), x.dtype),
        grid=(n_tiles,),
        in_specs=[
            pl.BlockSpec((tb, in_dim), lambda i: (i, 0)),        # x tile over batch
            pl.BlockSpec((in_dim, hidden), lambda i: (0, 0)),    # W1^T, VMEM-resident
            pl.BlockSpec((1, hidden), lambda i: (0, 0)),         # b1, resident
            pl.BlockSpec((hidden, out_dim), lambda i: (0, 0)),   # W2^T, resident
            pl.BlockSpec((1, out_dim), lambda i: (0, 0)),        # b2, resident
        ],
        out_specs=pl.BlockSpec((tb, out_dim), lambda i: (i, 0)),
        compiler_params=pltpu.CompilerParams(
            dimension_semantics=("parallel",)),  # shards batch steps across TCs on v7x
    )(x, w1t, b1_2d, w2t, b2_2d)

    return out[:B] if Bp != B else out


def init_params(input_dim, hidden_dim, output_dim, key):
    # fc1: weight = stack(cos(thetas), sin(thetas), dim=1) -> (hidden_dim, 2); bias = 0
    # (matches the PyTorch __init__; requires input_dim == 2)
    assert input_dim == 2, "init_weights in the reference module implies input_dim == 2"
    thetas = jnp.linspace(0.0, 2.0 * np.pi, hidden_dim)
    w1 = jnp.stack((jnp.cos(thetas), jnp.sin(thetas)), axis=1).astype(jnp.float32)
    b1 = jnp.zeros((hidden_dim,), jnp.float32)
    # fc2: PyTorch default Linear init: U(-1/sqrt(fan_in), 1/sqrt(fan_in))
    k_w, k_b = jax.random.split(key)
    bound = 1.0 / np.sqrt(hidden_dim)
    w2 = jax.random.uniform(k_w, (output_dim, hidden_dim), jnp.float32, -bound, bound)
    b2 = jax.random.uniform(k_b, (output_dim,), jnp.float32, -bound, bound)
    return w1, b1, w2, b2


if __name__ == "__main__":
    key = jax.random.PRNGKey(0)
    k_x, k_p = jax.random.split(key)

    input_dim, hidden_dim, output_dim = 2, 32, 4
    batch = 8

    x = jax.random.normal(k_x, (batch, input_dim), jnp.float32)
    w1, b1, w2, b2 = init_params(input_dim, hidden_dim, output_dim, k_p)

    # Layout plumbing done once, off the per-forward hot path.
    w1t, b1_2d, w2t, b2_2d = prepare_params(w1, b1, w2, b2)

    out = two_layer_nn(x, w1t, b1_2d, w2t, b2_2d)
    out = jax.block_until_ready(out)

    # Pure-JAX reference check of the forward semantics.
    ref = jnp.maximum(x @ w1.T + b1, 0.0) @ w2.T + b2
    np.testing.assert_allclose(np.asarray(out), np.asarray(ref), rtol=1e-5, atol=1e-5)

    # Also exercise a ragged, multi-tile batch (padding + >=2 grid steps path).
    xb = jax.random.normal(k_x, (1000, input_dim), jnp.float32)
    outb = jax.block_until_ready(two_layer_nn(xb, w1t, b1_2d, w2t, b2_2d, batch_tile=256))
    refb = jnp.maximum(xb @ w1.T + b1, 0.0) @ w2.T + b2
    np.testing.assert_allclose(np.asarray(outb), np.asarray(refb), rtol=1e-5, atol=1e-5)

    print("KERNEL_OK")
</pallas_src>

<mosaic_0001>
module attributes {stable_mosaic.version = 11 : i64} {
  func.func @two_layer_kernel(%arg0: i32, %arg1: memref<8x2xf32, #tpu.memory_space<vmem>>, %arg2: memref<2x32xf32, #tpu.memory_space<vmem>>, %arg3: memref<1x32xf32, #tpu.memory_space<vmem>>, %arg4: memref<32x4xf32, #tpu.memory_space<vmem>>, %arg5: memref<1x4xf32, #tpu.memory_space<vmem>>, %arg6: memref<8x4xf32, #tpu.memory_space<vmem>>) attributes {dimension_semantics = [#tpu.dimension_semantics<parallel>], iteration_bounds = array<i64: 1>, scalar_prefetch = 0 : i64, scratch_operands = 0 : i64, tpu.core_type = #tpu.core_type<tc>, window_params = [{transform_indices = @transform_0, window_bounds = array<i64: 8, 2>}, {pipeline_mode = #tpu.pipeline_mode<synchronous>, transform_indices = @transform_1, window_bounds = array<i64: 2, 32>}, {pipeline_mode = #tpu.pipeline_mode<synchronous>, transform_indices = @transform_2, window_bounds = array<i64: 1, 32>}, {pipeline_mode = #tpu.pipeline_mode<synchronous>, transform_indices = @transform_3, window_bounds = array<i64: 32, 4>}, {pipeline_mode = #tpu.pipeline_mode<synchronous>, transform_indices = @transform_4, window_bounds = array<i64: 1, 4>}, {transform_indices = @transform_5, window_bounds = array<i64: 8, 4>}]} {
    %c0 = arith.constant 0 : index
    %c0_0 = arith.constant 0 : index
    %0 = vector.load %arg1[%c0, %c0_0] : memref<8x2xf32, #tpu.memory_space<vmem>>, vector<8x2xf32>
    %c0_1 = arith.constant 0 : index
    %c0_2 = arith.constant 0 : index
    %1 = vector.load %arg3[%c0_1, %c0_2] : memref<1x32xf32, #tpu.memory_space<vmem>>, vector<1x32xf32>
    %2 = vector.extract_strided_slice %0 {offsets = [0, 0], sizes = [8, 1], strides = [1, 1]} : vector<8x2xf32> to vector<8x1xf32>
    %c0_3 = arith.constant 0 : index
    %c0_4 = arith.constant 0 : index
    %3 = vector.load %arg2[%c0_3, %c0_4] : memref<2x32xf32, #tpu.memory_space<vmem>>, vector<1x32xf32>
    %4 = vector.broadcast %2 : vector<8x1xf32> to vector<8x32xf32>
    %5 = vector.broadcast %3 : vector<1x32xf32> to vector<8x32xf32>
    %6 = arith.mulf %4, %5 : vector<8x32xf32>
    %7 = vector.broadcast %1 : vector<1x32xf32> to vector<8x32xf32>
    %8 = arith.addf %7, %6 : vector<8x32xf32>
    %9 = vector.extract_strided_slice %0 {offsets = [0, 1], sizes = [8, 1], strides = [1, 1]} : vector<8x2xf32> to vector<8x1xf32>
    %c1 = arith.constant 1 : index
    %c0_5 = arith.constant 0 : index
    %10 = vector.load %arg2[%c1, %c0_5] : memref<2x32xf32, #tpu.memory_space<vmem>>, vector<1x32xf32>
    %11 = vector.broadcast %9 : vector<8x1xf32> to vector<8x32xf32>
    %12 = vector.broadcast %10 : vector<1x32xf32> to vector<8x32xf32>
    %13 = arith.mulf %11, %12 : vector<8x32xf32>
    %14 = arith.addf %8, %13 : vector<8x32xf32>
    %cst = arith.constant 0.000000e+00 : f32
    %15 = vector.broadcast %cst : f32 to vector<8x32xf32>
    %16 = arith.maximumf %14, %15 : vector<8x32xf32>
    %c0_6 = arith.constant 0 : index
    %c0_7 = arith.constant 0 : index
    %17 = vector.load %arg4[%c0_6, %c0_7] : memref<32x4xf32, #tpu.memory_space<vmem>>, vector<32x4xf32>
    %cst_8 = arith.constant dense<0.000000e+00> : vector<8x4xf32>
    %18 = tpu.matmul %16, %17, %cst_8 {dimension_numbers = #tpu.dot_dimension_numbers<[1], [0], [0], [1], [0, 0, 1, 1], [], []>} : vector<8x32xf32>, vector<32x4xf32>, vector<8x4xf32> -> vector<8x4xf32>
    %c0_9 = arith.constant 0 : index
    %c0_10 = arith.constant 0 : index
    %19 = vector.load %arg5[%c0_9, %c0_10] : memref<1x4xf32, #tpu.memory_space<vmem>>, vector<1x4xf32>
    %20 = vector.broadcast %19 : vector<1x4xf32> to vector<8x4xf32>
    %21 = arith.addf %18, %20 : vector<8x4xf32>
    %c0_11 = arith.constant 0 : index
    %c0_12 = arith.constant 0 : index
    %22 = vector.load %arg6[%c0_11, %c0_12] : memref<8x4xf32, #tpu.memory_space<vmem>>, vector<8x4xf32>
    tpu.vector_store %arg6[%c0_11, %c0_12], %21 {strides = array<i32>} : memref<8x4xf32, #tpu.memory_space<vmem>>, vector<8x4xf32>,
    return
  }
  func.func @transform_0(%arg0: i32) -> (i32, i32) {
    %c0_i32 = arith.constant 0 : i32
    %c0_i32_0 = arith.constant 0 : i32
    return %arg0, %c0_i32 : i32, i32
  }
  func.func @transform_1(%arg0: i32) -> (i32, i32) {
    %c0_i32 = arith.constant 0 : i32
    %c0_i32_0 = arith.constant 0 : i32
    %c0_i32_1 = arith.constant 0 : i32
    return %c0_i32, %c0_i32_0 : i32, i32
  }
  func.func @transform_2(%arg0: i32) -> (i32, i32) {
    %c0_i32 = arith.constant 0 : i32
    %c0_i32_0 = arith.constant 0 : i32
    %c0_i32_1 = arith.constant 0 : i32
    return %c0_i32, %c0_i32_0 : i32, i32
  }
  func.func @transform_3(%arg0: i32) -> (i32, i32) {
    %c0_i32 = arith.constant 0 : i32
    %c0_i32_0 = arith.constant 0 : i32
    %c0_i32_1 = arith.constant 0 : i32
    return %c0_i32, %c0_i32_0 : i32, i32
  }
  func.func @transform_4(%arg0: i32) -> (i32, i32) {
    %c0_i32 = arith.constant 0 : i32
    %c0_i32_0 = arith.constant 0 : i32
    %c0_i32_1 = arith.constant 0 : i32
    return %c0_i32, %c0_i32_0 : i32, i32
  }
  func.func @transform_5(%arg0: i32) -> (i32, i32) {
    %c0_i32 = arith.constant 0 : i32
    %c0_i32_0 = arith.constant 0 : i32
    return %arg0, %c0_i32 : i32, i32
  }
}

</mosaic_0001>

<llo_original>
// kernel: tpu_custom_call.1
$region0: #{tpu_custom_call.1}
  #allocation0 [shape = 'u32[]', space=smem, size = 0x4, offset = 0x4, fixed_abs, tag = 'smem constant byte address 0x4 - core index']
  #allocation1 [shape = 'u32[144,128]{1,0:T(1,128)}', space=vmem, size = 0x12000, scoped, tag = 'internal scratch']
  %s0 = inlined_call_operand.vmem [shape: f32[8,2], index: 0, kind: input, shape index: {}]
  %s1 = inlined_call_operand.vmem [shape: f32[2,32], index: 1, kind: input, shape index: {}]
  %s2 = inlined_call_operand.vmem [shape: f32[1,32], index: 2, kind: input, shape index: {}]
  %s3 = inlined_call_operand.vmem [shape: f32[32,4], index: 3, kind: input, shape index: {}]
  %s4 = inlined_call_operand.vmem [shape: f32[1,4], index: 4, kind: input, shape index: {}]
  %s5 = inlined_call_operand.vmem [shape: f32[8,4], index: 5, kind: output, shape index: {}]
  %s6 = sld [smem:[#allocation0]]
  $region30: #{tpu_custom_call.1} parent=0
    _
  %s8 = ssub.s32 1, %s6
  %s9 = scalar_select 0, %s8, %s6
  // Predicated region
  $region2: #{tpu_custom_call.1} parent=0 // pred_check
    _
  $region3: #{tpu_custom_call.1} parent=0 // pred_check_branch
    %11 = sbr.rel (0) target = $region5
  $region4: #{tpu_custom_call.1} parent=0 // pred_region
    _
  $region5: #{tpu_custom_call.1} parent=0 // pred_fallthru
    _
  // Predicated region
  $region6: #{tpu_custom_call.1} parent=0 // pred_check
    _
  $region7: #{tpu_custom_call.1} parent=0 // pred_check_branch
    %13 = sbr.rel (0) target = $region9
  $region8: #{tpu_custom_call.1} parent=0 // pred_region
    _
  $region9: #{tpu_custom_call.1} parent=0 // pred_fallthru
    _
  // Predicated region
  $region10: #{tpu_custom_call.1} parent=0 // pred_check
    _
  $region11: #{tpu_custom_call.1} parent=0 // pred_check_branch
    %15 = sbr.rel (0) target = $region13
  $region12: #{tpu_custom_call.1} parent=0 // pred_region
    _
  $region13: #{tpu_custom_call.1} parent=0 // pred_fallthru
    _
  // Predicated region
  $region14: #{tpu_custom_call.1} parent=0 // pred_check
    _
  $region15: #{tpu_custom_call.1} parent=0 // pred_check_branch
    %17 = sbr.rel (0) target = $region17
  $region16: #{tpu_custom_call.1} parent=0 // pred_region
    _
  $region17: #{tpu_custom_call.1} parent=0 // pred_fallthru
    _
  // Predicated region
  $region18: #{tpu_custom_call.1} parent=0 // pred_check
    _
  $region19: #{tpu_custom_call.1} parent=0 // pred_check_branch
    %19 = sbr.rel (0) target = $region21
  $region20: #{tpu_custom_call.1} parent=0 // pred_region
    _
  $region21: #{tpu_custom_call.1} parent=0 // pred_fallthru
    _
  %v20 = vld [vmem:[%s0] sm:$0xff]
  %v21 = vld [vmem:[%s2] sm:$0x1]
  %v22 = vld [vmem:[%s1] sm:$0x1]
  %24 = vset.pattern.permute.xlu0 0
  %25 = vperm.xlu0 %24, %v20
  %v26 = vpop.permute.xlu0 %25
  %v28 = vlaneseq
  %v29 = vshrl.u32 %v28, 7
  %v30 = vsub.s32 0, %v29
  %v31 = vrot.slane %v22, %v30
  %v32 = vmul.f32 %v26, %v31
  %v34 = vlaneseq
  %v35 = vshrl.u32 %v34, 7
  %v36 = vsub.s32 0, %v35
  %v37 = vrot.slane %v21, %v36
  %v39 = vadd.f32 %v37, %v32
  %v40 = vld [vmem:[%s1 + $0x1] sm:$0x1]
  %41 = vset.pattern.permute.xlu0 1
  %42 = vperm.xlu0 %41, %v20
  %v43 = vpop.permute.xlu0 %42
  %v45 = vlaneseq
  %v46 = vshrl.u32 %v45, 7
  %v47 = vsub.s32 0, %v46
  %v48 = vrot.slane %v40, %v47
  %v49 = vmul.f32 %v43, %v48
  %v50 = vadd.f32 %v39, %v49
  %v51 = vmax.f32 %v50, 0.0
  %v52 = vld [vmem:[%s3] sm:$0xff]
  %v53 = vld [vmem:[%s3 + $0x8] sm:$0xff]
  %v54 = vld [vmem:[%s3 + $0x10] sm:$0xff]
  %v55 = vld [vmem:[%s3 + $0x18] sm:$0xff]
  %v56 = vld [vmem:[%s4] sm:$0x1]
  %v58 = vlaneseq
  %v59 = vshrl.u32 %v58, 7
  %v60 = vsub.s32 0, %v59
  %v61 = vrot.slane %v56, %v60
  %vm63 = vcmask 261120
  %v65 = vsel %vm63, %v51, 0
  %67 = vmatprep.subr.mxu0 0.0
  %68 = vmatpush1.msra.mxu0 %v52
  %69 = vmatprep.subr.mxu0 0.0
  %70 = vmatpush1.msra.mxu0 %v53
  %71 = vmatprep.subr.mxu0 0.0
  %72 = vmatpush1.msra.mxu0 %v54
  %73 = vmatprep.subr.mxu0 0.0
  %74 = vmatpush1.msra.mxu0 %v55
  %75 = vmatprep.subr.mxu0 0.0
  %76 = vmatpush1.msra.mxu0 0.0
  %77 = vmatprep.subr.mxu0 0.0
  %78 = vmatpush1.msra.mxu0 0.0
  %79 = vmatprep.subr.mxu0 0.0
  %80 = vmatpush1.msra.mxu0 0.0
  %81 = vmatprep.subr.mxu0 0.0
  %82 = vmatpush1.msra.mxu0 0.0
  %83 = vmatprep.subr.mxu0 0.0
  %84 = vmatpush1.msra.mxu0 0.0
  %85 = vmatprep.subr.mxu0 0.0
  %86 = vmatpush1.msra.mxu0 0.0
  %87 = vmatprep.subr.mxu0 0.0
  %88 = vmatpush1.msra.mxu0 0.0
  %89 = vmatprep.subr.mxu0 0.0
  %90 = vmatpush1.msra.mxu0 0.0
  %91 = vmatprep.subr.mxu0 0.0
  %92 = vmatpush1.msra.mxu0 0.0
  %93 = vmatprep.subr.mxu0 0.0
  %94 = vmatpush1.msra.mxu0 0.0
  %95 = vmatprep.subr.mxu0 0.0
  %96 = vmatpush1.msra.mxu0 0.0
  %97 = vmatprep.subr.mxu0 0.0
  %98 = vmatpush1.msra.mxu0 0.0
  %99 = vmatprep.subr.mxu0 0.0
  %100 = vmatpush1.msra.mxu0 0.0
  %101 = vmatprep.subr.mxu0 0.0
  %102 = vmatpush1.msra.mxu0 0.0
  %103 = vmatprep.subr.mxu0 0.0
  %104 = vmatpush1.msra.mxu0 0.0
  %105 = vmatprep.subr.mxu0 0.0
  %106 = vmatpush1.msra.mxu0 0.0
  %107 = vmatprep.subr.mxu0 0.0
  %108 = vmatpush1.msra.mxu0 0.0
  %109 = vmatprep.subr.mxu0 0.0
  %110 = vmatpush1.msra.mxu0 0.0
  %111 = vmatprep.subr.mxu0 0.0
  %112 = vmatpush1.msra.mxu0 0.0
  %113 = vmatprep.subr.mxu0 0.0
  %114 = vmatpush1.msra.mxu0 0.0
  %115 = vmatprep.subr.mxu0 0.0
  %116 = vmatpush1.msra.mxu0 0.0
  %117 = vmatprep.subr.mxu0 0.0
  %118 = vmatpush1.msra.mxu0 0.0
  %119 = vmatprep.subr.mxu0 0.0
  %120 = vmatpush1.msra.mxu0 0.0
  %121 = vmatprep.subr.mxu0 0.0
  %122 = vmatpush1.msra.mxu0 0.0
  %123 = vmatprep.subr.mxu0 0.0
  %124 = vmatpush1.msra.mxu0 0.0
  %125 = vmatprep.subr.mxu0 0.0
  %126 = vmatpush1.msra.mxu0 0.0
  %127 = vmatprep.subr.mxu0 0.0
  %128 = vmatpush1.msra.mxu0 0.0
  %129 = vmatprep.subr.mxu0 0.0
  %130 = vmatpush1.msra.mxu0 0.0
  %131 = vmatprep.mubr.f32.mxu0 0.0
  %132 = vmatmul.mubr.f32.gmra.mrb[0].mxu0 %v65
  %v133 = vpop.f32.mrb[0].mxu0
  %v134 = vadd.f32 %v61, %v133
  %v135 = vpop.f32.mrb[0].mxu0
  %136 = vdwg.mxu0
  %vm137 = vcmask 31744
  %138 = vst.msk [vmem:[%s5] sm:$0xff] %vm137, %v134
  // Predicated region
  $region22: #{tpu_custom_call.1} parent=0 // pred_check
    _
  $region23: #{tpu_custom_call.1} parent=0 // pred_check_branch
    %140 = sbr.rel (0) target = $region25
  $region24: #{tpu_custom_call.1} parent=0 // pred_region
    _
  $region25: #{tpu_custom_call.1} parent=0 // pred_fallthru
    _
  // Predicated region
  $region26: #{tpu_custom_call.1} parent=0 // pred_check
    _
  $region27: #{tpu_custom_call.1} parent=0 // pred_check_branch
    %142 = sbr.rel (0) target = $region29
  $region28: #{tpu_custom_call.1} parent=0 // pred_region
    _
  $region29: #{tpu_custom_call.1} parent=0 // pred_fallthru
    _

</llo_original>
